<compile_context>
chip_gen: v5e
topology: v5e:2x2
jax: 0.10.0
libtpu: 0.0.40
codegen_flags: <defaults>
</compile_context>

<pallas_src>
import functools

import jax
import jax.numpy as jnp
from jax.experimental import pallas as pl
from jax.experimental.pallas import tpu as pltpu


def _slahead_decode_kernel(
    fea_ref,        # [Bb, T, C]  features for this batch block (compute dtype)
    w_i2h_ref,      # [C, H]      attention i2h (no bias)
    w_att_ref,      # [H, 4H]     fused [attention h2h | GRU W_hh (r|z|n)]
    b_att_ref,      # [1, 4H]     fused [b_h2h | b_hh]                     (f32)
    w_score_ref,    # [H, 1]      attention score (no bias)
    w_ih_ref,       # [C+E, 3H]   GRU W_ih over [context | onehot], gates r|z|n
    b_ih_ref,       # [1, 3H]                                              (f32)
    w_gen1_ref,     # [H, 2H]     fused first Linear of structure|loc generators
    b_gen1_ref,     # [1, 2H]                                              (f32)
    w_gen2_ref,     # [2H, P]     block-diagonal fused second Linear (lane-padded)
    b_gen2_ref,     # [1, P]                                               (f32)
    out_ref,        # [S, Bb, P]  per-step rows: [structure | loc | 0-pad] (f32)
    proj_ref,       # VMEM scratch [Bb, T, H]: hoisted fea @ W_i2h (compute dtype)
    *, hidden_size, num_embeddings, eos_id, total_valid,
):
    f32 = jnp.float32
    H = hidden_size
    E = num_embeddings
    Bb, T, C = fea_ref.shape
    S, _, P = out_ref.shape
    cdt = fea_ref.dtype

    # ---- step-invariant attention projection, computed once per block ----
    proj = jnp.dot(fea_ref[...].reshape(Bb * T, C), w_i2h_ref[...],
                   preferred_element_type=f32)                     # [Bb*T, H] f32 acc
    proj_ref[...] = proj.astype(cdt).reshape(Bb, T, H)

    # ---- loop-invariant loads / constants, hoisted out of the decode loop ----
    b_att = b_att_ref[...]
    b_ih = b_ih_ref[...]
    b_gen1 = b_gen1_ref[...]
    b_gen2 = b_gen2_ref[...]
    lane_e = jax.lax.broadcasted_iota(jnp.int32, (1, E), 1)
    row_b = jax.lax.broadcasted_iota(jnp.int32, (Bb, 1), 0)

    # Padded (invalid) rows of the last block start out "already finished" so
    # they never delay the block's early exit.
    valid_in_block = total_valid - pl.program_id(0) * Bb           # traced scalar
    seen0 = (row_b >= valid_in_block).astype(f32)                  # [Bb, 1]

    def step(i, carry):
        hidden, onehot, seen = carry       # f32 [Bb,H], cdt [Bb,E], f32 [Bb,1]

        def do_step(operands):
            hidden, onehot, seen = operands
            h_c = hidden.astype(cdt)

            # Fused attention-h2h / GRU-hh projection of the previous hidden.
            hh_all = (jnp.dot(h_c, w_att_ref[...], preferred_element_type=f32)
                      + b_att)                                     # [Bb, 4H] f32
            prev_proj = hh_all[:, 0:H]                             # attention h2h part

            # ---------------- attention over T ----------------
            res = jnp.tanh(proj_ref[...]
                           + prev_proj[:, None, :].astype(cdt))    # [Bb, T, H] cdt
            e = jnp.dot(res.reshape(Bb * T, H), w_score_ref[...],
                        preferred_element_type=f32).reshape(Bb, T, 1)
            m = jnp.max(e, axis=1, keepdims=True)                  # [Bb, 1, 1]
            p = jnp.exp(e - m)                                     # [Bb, T, 1]
            denom = jnp.sum(p, axis=1, keepdims=True)              # [Bb, 1, 1]
            ctx = jnp.sum(p * fea_ref[...], axis=1)                # [Bb, C] f32
            ctx = ctx * pl.reciprocal(denom[:, 0, :], approx=True)

            # ---------------- single-step GRU (fused gates r|z|n) ----------------
            gru_in = jnp.concatenate([ctx.astype(cdt), onehot], axis=1)   # [Bb, C+E]
            gx = (jnp.dot(gru_in, w_ih_ref[...], preferred_element_type=f32)
                  + b_ih)                                          # [Bb, 3H]
            r = jax.nn.sigmoid(gx[:, 0:H] + hh_all[:, H:2 * H])
            z = jax.nn.sigmoid(gx[:, H:2 * H] + hh_all[:, 2 * H:3 * H])
            n = jnp.tanh(gx[:, 2 * H:3 * H] + r * hh_all[:, 3 * H:4 * H])
            h_new = (1.0 - z) * n + z * hidden                     # [Bb, H] f32

            # ---------------- fused structure / loc generators ----------------
            hid2 = (jnp.dot(h_new.astype(cdt), w_gen1_ref[...],
                            preferred_element_type=f32) + b_gen1)  # [Bb, 2H]
            row = (jnp.dot(hid2.astype(cdt), w_gen2_ref[...],
                           preferred_element_type=f32) + b_gen2)   # [Bb, P]

            # ---------------- greedy feedback + EOS bookkeeping ----------------
            struct = row[:, 0:E]
            mx = jnp.max(struct, axis=1, keepdims=True)
            idx = jnp.min(jnp.where(struct == mx, lane_e, E),
                          axis=1, keepdims=True)                   # [Bb, 1] first argmax
            onehot_new = (lane_e == idx).astype(cdt)               # [Bb, E]
            seen_new = jnp.maximum(seen, (idx == eos_id).astype(f32))
            return h_new, onehot_new, seen_new, row

        def skip(operands):
            hidden, onehot, seen = operands
            return hidden, onehot, seen, jnp.zeros((Bb, P), f32)

        # Early exit: once every (valid) row of this block has emitted EOS, the
        # heavy body is skipped at runtime and zero rows are emitted.
        not_done = jnp.min(seen) < 0.5
        h_new, onehot_new, seen_new, row = jax.lax.cond(
            not_done, do_step, skip, (hidden, onehot, seen))

        # Step-major layout -> one contiguous lane-dense [1, Bb, P] slab store.
        out_ref[pl.ds(i, 1), :, :] = row[None]
        return h_new, onehot_new, seen_new

    h0 = jnp.zeros((Bb, H), f32)
    onehot0 = (jnp.zeros((Bb, 1), jnp.int32) == lane_e).astype(cdt)  # pre_chars = 0
    jax.lax.fori_loop(0, S, step, (h0, onehot0, seen0))


class SLAHeadPallas:
    def __init__(self, in_channels=96, is_train=False, hidden_size=256,
                 out_channels=50, max_text_length=500, loc_reg_num=4,
                 key=None, compute_dtype=jnp.bfloat16, max_batch_block=32):
        self.in_channels = in_channels
        self.is_train = is_train
        self.hidden_size = hidden_size
        self.out_channels = out_channels
        self.num_embeddings = out_channels
        self.max_text_length = max_text_length
        self.loc_reg_num = loc_reg_num
        self.eos = self.num_embeddings - 1
        self.compute_dtype = compute_dtype
        # rows per grid program; multiple of 8 keeps multi-block output tiles aligned
        self.max_batch_block = max(8, (max_batch_block // 8) * 8)

        if key is None:
            key = jax.random.PRNGKey(0)
        keys = iter(jax.random.split(key, 20))

        def w(shape, scale=0.1):
            return jax.random.normal(next(keys), shape, dtype=jnp.float32) * scale

        C, H, E, L = in_channels, hidden_size, out_channels, loc_reg_num
        P = ((E + L + 127) // 128) * 128          # fused generator width, lane padded
        self.out_pad = P

        # "Logical" parameters, already transposed to (in_dim, out_dim) layout.
        w_i2h = w((C, H)); w_h2h = w((H, H)); b_h2h = w((1, H)); w_score = w((H, 1))
        w_ih = w((C + E, 3 * H)); b_ih = w((1, 3 * H))          # GRU W_ih over [ctx|onehot]
        w_hh = w((H, 3 * H)); b_hh = w((1, 3 * H))
        sg1_w = w((H, H)); sg1_b = w((1, H)); sg2_w = w((H, E)); sg2_b = w((1, E))
        lg1_w = w((H, H)); lg1_b = w((1, H)); lg2_w = w((H, L)); lg2_b = w((1, L))

        # Fusions: [h2h | W_hh] for the previous-hidden matmul; generators layer-1
        # side-by-side; layer-2 block-diagonal + lane pad to P.
        w_att = jnp.concatenate([w_h2h, w_hh], axis=1)           # [H, 4H]
        b_att = jnp.concatenate([b_h2h, b_hh], axis=1)           # [1, 4H]
        w_gen1 = jnp.concatenate([sg1_w, lg1_w], axis=1)         # [H, 2H]
        b_gen1 = jnp.concatenate([sg1_b, lg1_b], axis=1)         # [1, 2H]
        w_gen2 = jnp.zeros((2 * H, P), jnp.float32)
        w_gen2 = w_gen2.at[:H, :E].set(sg2_w).at[H:, E:E + L].set(lg2_w)
        b_gen2 = jnp.zeros((1, P), jnp.float32)
        b_gen2 = b_gen2.at[:, :E].set(sg2_b).at[:, E:E + L].set(lg2_b)

        cdt = compute_dtype
        # Order must match _slahead_decode_kernel's signature (after fea_ref).
        self.kernel_params = (
            w_i2h.astype(cdt), w_att.astype(cdt), b_att, w_score.astype(cdt),
            w_ih.astype(cdt), b_ih, w_gen1.astype(cdt), b_gen1,
            w_gen2.astype(cdt), b_gen2,
        )

    # ---- full autoregressive decode as ONE pallas_call, grid over batch blocks ----
    def _decode_all(self, fea_btc):
        B, T, C = fea_btc.shape
        H = self.hidden_size
        S = self.max_text_length + 1
        P = self.out_pad
        cdt = self.compute_dtype

        # Batch-block tiling: every per-step matmul gets M = Bb rows.
        if B <= self.max_batch_block:
            Bb, B_pad = B, B
        else:
            Bb = self.max_batch_block
            B_pad = -(-B // Bb) * Bb
            if B_pad != B:
                fea_btc = jnp.pad(fea_btc, ((0, B_pad - B), (0, 0), (0, 0)))
        num_blocks = B_pad // Bb

        kernel = functools.partial(
            _slahead_decode_kernel, hidden_size=H,
            num_embeddings=self.num_embeddings, eos_id=self.eos, total_valid=B)

        weight_specs = [pl.BlockSpec(p.shape, lambda b: (0, 0))
                        for p in self.kernel_params]
        in_specs = [pl.BlockSpec((Bb, T, C), lambda b: (b, 0, 0))] + weight_specs
        # Step-major output layout; wrapper transposes back to [B, S, P].
        out_specs = pl.BlockSpec((S, Bb, P), lambda b: (0, b, 0))
        out_shape = jax.ShapeDtypeStruct((S, B_pad, P), jnp.float32)

        # VMEM budget: resident weights (constant index_map -> fetched once, not
        # double-buffered), double-buffered fea/out blocks, proj scratch, slack.
        itemsize = jnp.dtype(cdt).itemsize
        weight_bytes = sum(int(p.size) * p.dtype.itemsize for p in self.kernel_params)
        est = (weight_bytes
               + 2 * Bb * T * C * itemsize
               + Bb * T * H * itemsize
               + 2 * S * Bb * P * 4
               + (1 << 20))
        vmem_limit = None
        if est > 32 * 1024 * 1024:
            try:
                phys = pltpu.get_tpu_info().vmem_capacity_bytes
            except Exception:
                phys = 64 * 1024 * 1024
            cap = max(32 * 1024 * 1024, phys - (8 << 20))
            vmem_limit = min(int(est * 5 // 4), cap)

        out = pl.pallas_call(
            kernel,
            grid=(num_blocks,),
            in_specs=in_specs,
            out_specs=out_specs,
            out_shape=out_shape,
            scratch_shapes=[pltpu.VMEM((Bb, T, H), cdt)],
            compiler_params=pltpu.CompilerParams(
                dimension_semantics=("parallel",),
                vmem_limit_bytes=vmem_limit),
        )(fea_btc, *self.kernel_params)
        return jnp.transpose(out, (1, 0, 2))[:B]                   # [B, S, P]

    # ---- full forward, mirroring the torch module ----
    def __call__(self, fea_list):
        fea = fea_list[-1]                                         # NCHW [B, C, Hi, Wi]
        B, C = fea.shape[0], fea.shape[1]
        fea = jnp.transpose(fea.reshape(B, C, -1), (0, 2, 1))      # [B, T, C]
        fea = fea.astype(self.compute_dtype)

        S = self.max_text_length + 1
        E, L = self.out_channels, self.loc_reg_num

        out = self._decode_all(fea)                                # [B, S, P] f32
        struct_all = out[:, :, :E]                                 # [B, S, E] logits
        loc_all = out[:, :, E:E + L]                               # [B, S, L]

        # EOS bookkeeping (mirrors the torch loop's break), once on device.
        ids = jnp.argmax(struct_all, axis=-1)
        seen = jnp.cumsum((ids == self.eos).astype(jnp.int32), axis=1) > 0
        all_seen = jnp.all(seen, axis=0)                           # [S]
        i_stop = jnp.where(jnp.any(all_seen), jnp.argmax(all_seen), S - 1)

        if self.is_train:
            # torch keeps the pre-allocated zero buffers of length max_text_length+1
            keep = (jnp.arange(S) <= i_stop)[None, :, None]
            structure_preds = jnp.where(keep, struct_all, 0.0)
            loc_preds = jnp.where(keep, loc_all, 0.0)
        else:
            # Single host sync: output length is data-dependent, as in torch.
            n = int(jax.device_get(i_stop)) + 1
            # torch: F.softmax on a 3-D tensor with implicit dim -> legacy dim=0.
            structure_preds = jax.nn.softmax(struct_all[:, :n], axis=0)
            loc_preds = loc_all[:, :n]
        return structure_preds, loc_preds


if __name__ == "__main__":
    # Small shapes consistent with the module: B=2, C=8, spatial 4x4 (T=16),
    # hidden=32, out_channels=16, max_text_length=8, loc_reg_num=4.
    B, C, Hi, Wi = 2, 8, 4, 4
    head = SLAHeadPallas(in_channels=C, is_train=False, hidden_size=32,
                         out_channels=16, max_text_length=8, loc_reg_num=4,
                         key=jax.random.PRNGKey(42))
    x = jax.random.normal(jax.random.PRNGKey(0), (B, C, Hi, Wi), dtype=jnp.float32)

    structure_preds, loc_preds = head([x])
    jax.block_until_ready((structure_preds, loc_preds))

    assert structure_preds.shape[0] == B and structure_preds.shape[-1] == 16
    assert loc_preds.shape[0] == B and loc_preds.shape[-1] == 4
    assert structure_preds.shape[1] == loc_preds.shape[1]
    print("KERNEL_OK")
</pallas_src>

<mosaic_0001>
module attributes {stable_mosaic.version = 11 : i64} {
  func.func @_slahead_decode_kernel(%arg0: i32, %arg1: memref<2x16x8xbf16, #tpu.memory_space<vmem>>, %arg2: memref<8x32xbf16, #tpu.memory_space<vmem>>, %arg3: memref<32x128xbf16, #tpu.memory_space<vmem>>, %arg4: memref<1x128xf32, #tpu.memory_space<vmem>>, %arg5: memref<32x1xbf16, #tpu.memory_space<vmem>>, %arg6: memref<24x96xbf16, #tpu.memory_space<vmem>>, %arg7: memref<1x96xf32, #tpu.memory_space<vmem>>, %arg8: memref<32x64xbf16, #tpu.memory_space<vmem>>, %arg9: memref<1x64xf32, #tpu.memory_space<vmem>>, %arg10: memref<64x128xbf16, #tpu.memory_space<vmem>>, %arg11: memref<1x128xf32, #tpu.memory_space<vmem>>, %arg12: memref<9x2x128xf32, #tpu.memory_space<vmem>>, %arg13: memref<2x16x32xbf16, #tpu.memory_space<vmem>>) attributes {dimension_semantics = [#tpu.dimension_semantics<parallel>], iteration_bounds = array<i64: 1>, scalar_prefetch = 0 : i64, scratch_operands = 1 : i64, tpu.core_type = #tpu.core_type<tc>, window_params = [{transform_indices = @transform_0, window_bounds = array<i64: 2, 16, 8>}, {pipeline_mode = #tpu.pipeline_mode<synchronous>, transform_indices = @transform_1, window_bounds = array<i64: 8, 32>}, {pipeline_mode = #tpu.pipeline_mode<synchronous>, transform_indices = @transform_2, window_bounds = array<i64: 32, 128>}, {pipeline_mode = #tpu.pipeline_mode<synchronous>, transform_indices = @transform_3, window_bounds = array<i64: 1, 128>}, {pipeline_mode = #tpu.pipeline_mode<synchronous>, transform_indices = @transform_4, window_bounds = array<i64: 32, 1>}, {pipeline_mode = #tpu.pipeline_mode<synchronous>, transform_indices = @transform_5, window_bounds = array<i64: 24, 96>}, {pipeline_mode = #tpu.pipeline_mode<synchronous>, transform_indices = @transform_6, window_bounds = array<i64: 1, 96>}, {pipeline_mode = #tpu.pipeline_mode<synchronous>, transform_indices = @transform_7, window_bounds = array<i64: 32, 64>}, {pipeline_mode = #tpu.pipeline_mode<synchronous>, transform_indices = @transform_8, window_bounds = array<i64: 1, 64>}, {pipeline_mode = #tpu.pipeline_mode<synchronous>, transform_indices = @transform_9, window_bounds = array<i64: 64, 128>}, {pipeline_mode = #tpu.pipeline_mode<synchronous>, transform_indices = @transform_10, window_bounds = array<i64: 1, 128>}, {transform_indices = @transform_11, window_bounds = array<i64: 9, 2, 128>}]} {
    %c0 = arith.constant 0 : index
    %c0_0 = arith.constant 0 : index
    %c0_1 = arith.constant 0 : index
    %0 = vector.load %arg1[%c0, %c0_0, %c0_1] : memref<2x16x8xbf16, #tpu.memory_space<vmem>>, vector<2x16x8xbf16>
    %1 = vector.shape_cast %0 : vector<2x16x8xbf16> to vector<32x8xbf16>
    %c0_2 = arith.constant 0 : index
    %c0_3 = arith.constant 0 : index
    %2 = vector.load %arg2[%c0_2, %c0_3] : memref<8x32xbf16, #tpu.memory_space<vmem>>, vector<8x32xbf16>
    %cst = arith.constant dense<0.000000e+00> : vector<32x32xf32>
    %3 = tpu.matmul %1, %2, %cst {dimension_numbers = #tpu.dot_dimension_numbers<[1], [0], [0], [1], [0, 0, 1, 1], [], []>} : vector<32x8xbf16>, vector<8x32xbf16>, vector<32x32xf32> -> vector<32x32xf32>
    %4 = arith.truncf %3 : vector<32x32xf32> to vector<32x32xbf16>
    %5 = vector.shape_cast %4 : vector<32x32xbf16> to vector<2x16x32xbf16>
    %c0_4 = arith.constant 0 : index
    %c0_5 = arith.constant 0 : index
    %c0_6 = arith.constant 0 : index
    %6 = vector.load %arg13[%c0_4, %c0_5, %c0_6] : memref<2x16x32xbf16, #tpu.memory_space<vmem>>, vector<2x16x32xbf16>
    tpu.vector_store %arg13[%c0_4, %c0_5, %c0_6], %5 {strides = array<i32>} : memref<2x16x32xbf16, #tpu.memory_space<vmem>>, vector<2x16x32xbf16>,
    %c0_7 = arith.constant 0 : index
    %c0_8 = arith.constant 0 : index
    %7 = vector.load %arg4[%c0_7, %c0_8] : memref<1x128xf32, #tpu.memory_space<vmem>>, vector<1x128xf32>
    %c0_9 = arith.constant 0 : index
    %c0_10 = arith.constant 0 : index
    %8 = vector.load %arg7[%c0_9, %c0_10] : memref<1x96xf32, #tpu.memory_space<vmem>>, vector<1x96xf32>
    %c0_11 = arith.constant 0 : index
    %c0_12 = arith.constant 0 : index
    %9 = vector.load %arg9[%c0_11, %c0_12] : memref<1x64xf32, #tpu.memory_space<vmem>>, vector<1x64xf32>
    %c0_13 = arith.constant 0 : index
    %c0_14 = arith.constant 0 : index
    %10 = vector.load %arg11[%c0_13, %c0_14] : memref<1x128xf32, #tpu.memory_space<vmem>>, vector<1x128xf32>
    %11 = tpu.iota {dimensions = array<i32: 1>} : vector<1x16xi32>
    %12 = tpu.iota {dimensions = array<i32: 0>} : vector<2x1xi32>
    %c2_i32 = arith.constant 2 : i32
    %13 = arith.muli %arg0, %c2_i32 : i32
    %c2_i32_15 = arith.constant 2 : i32
    %14 = arith.subi %c2_i32_15, %13 : i32
    %15 = vector.broadcast %14 : i32 to vector<2x1xi32>
    %16 = arith.cmpi sge, %12, %15 : vector<2x1xi32>
    %17 = arith.extui %16 : vector<2x1xi1> to vector<2x1xi32>
    %18 = arith.sitofp %17 : vector<2x1xi32> to vector<2x1xf32>
    %cst_16 = arith.constant 0.000000e+00 : f32
    %19 = vector.broadcast %cst_16 : f32 to vector<2x32xf32>
    %c0_i32 = arith.constant 0 : i32
    %20 = vector.broadcast %c0_i32 : i32 to vector<2x1xi32>
    %21 = vector.broadcast %20 : vector<2x1xi32> to vector<2x16xi32>
    %22 = vector.broadcast %11 : vector<1x16xi32> to vector<2x16xi32>
    %23 = arith.cmpi eq, %21, %22 : vector<2x16xi32>
    %24 = arith.extui %23 : vector<2x16xi1> to vector<2x16xi32>
    %25 = arith.sitofp %24 : vector<2x16xi32> to vector<2x16xf32>
    %26 = arith.truncf %25 : vector<2x16xf32> to vector<2x16xbf16>
    %c0_i32_17 = arith.constant 0 : i32
    %c9_i32 = arith.constant 9 : i32
    %27 = arith.addi %c0_i32_17, %c9_i32 : i32
    %c1_i32 = arith.constant 1 : i32
    %28:3 = scf.for %arg14 = %c0_i32_17 to %27 step %c1_i32 iter_args(%arg15 = %19, %arg16 = %26, %arg17 = %18) -> (vector<2x32xf32>, vector<2x16xbf16>, vector<2x1xf32>)  : i32 {
      %29 = vector.shape_cast %arg17 : vector<2x1xf32> to vector<1x2x1xf32>
      %cst_19 = arith.constant dense<0x7F800000> : vector<1xf32>
      %30 = vector.multi_reduction <minimumf>, %29, %cst_19 [1, 2] : vector<1x2x1xf32> to vector<1xf32>
      %31 = vector.shape_cast %30 : vector<1xf32> to vector<1x1x1xf32>
      %32 = vector.extract %31[0, 0, 0] : f32 from vector<1x1x1xf32>
      %cst_20 = arith.constant 5.000000e-01 : f32
      %33 = arith.cmpf olt, %32, %cst_20 : f32
      %34 = arith.extui %33 : i1 to i32
      %c0_i32_21 = arith.constant 0 : i32
      %35 = arith.cmpi ne, %34, %c0_i32_21 : i32
      %36:4 = scf.if %35 -> (vector<2x32xf32>, vector<2x16xbf16>, vector<2x1xf32>, vector<2x128xf32>) {
        %40 = arith.truncf %arg15 : vector<2x32xf32> to vector<2x32xbf16>
        %c0_24 = arith.constant 0 : index
        %c0_25 = arith.constant 0 : index
        %41 = vector.load %arg3[%c0_24, %c0_25] : memref<32x128xbf16, #tpu.memory_space<vmem>>, vector<32x128xbf16>
        %cst_26 = arith.constant dense<0.000000e+00> : vector<2x128xf32>
        %42 = tpu.matmul %40, %41, %cst_26 {dimension_numbers = #tpu.dot_dimension_numbers<[1], [0], [0], [1], [0, 0, 1, 1], [], []>} : vector<2x32xbf16>, vector<32x128xbf16>, vector<2x128xf32> -> vector<2x128xf32>
        %43 = vector.broadcast %7 : vector<1x128xf32> to vector<2x128xf32>
        %44 = arith.addf %42, %43 : vector<2x128xf32>
        %45 = vector.extract_strided_slice %44 {offsets = [0, 0], sizes = [2, 32], strides = [1, 1]} : vector<2x128xf32> to vector<2x32xf32>
        %c0_27 = arith.constant 0 : index
        %c0_28 = arith.constant 0 : index
        %c0_29 = arith.constant 0 : index
        %46 = vector.load %arg13[%c0_27, %c0_28, %c0_29] : memref<2x16x32xbf16, #tpu.memory_space<vmem>>, vector<2x16x32xbf16>
        %47 = vector.shape_cast %45 : vector<2x32xf32> to vector<2x1x32xf32>
        %48 = arith.truncf %47 : vector<2x1x32xf32> to vector<2x1x32xbf16>
        %49 = vector.broadcast %48 : vector<2x1x32xbf16> to vector<2x16x32xbf16>
        %50 = arith.addf %46, %49 : vector<2x16x32xbf16>
        %51 = math.tanh %50 : vector<2x16x32xbf16>
        %52 = vector.shape_cast %51 : vector<2x16x32xbf16> to vector<32x32xbf16>
        %c0_30 = arith.constant 0 : index
        %c0_31 = arith.constant 0 : index
        %53 = vector.load %arg5[%c0_30, %c0_31] : memref<32x1xbf16, #tpu.memory_space<vmem>>, vector<32x1xbf16>
        %cst_32 = arith.constant dense<0.000000e+00> : vector<32x1xf32>
        %54 = tpu.matmul %52, %53, %cst_32 {dimension_numbers = #tpu.dot_dimension_numbers<[1], [0], [0], [1], [0, 0, 1, 1], [], []>} : vector<32x32xbf16>, vector<32x1xbf16>, vector<32x1xf32> -> vector<32x1xf32>
        %55 = vector.shape_cast %54 : vector<32x1xf32> to vector<2x16x1xf32>
        %cst_33 = arith.constant dense<0xFF800000> : vector<2x1xf32>
        %56 = vector.multi_reduction <maximumf>, %55, %cst_33 [1] : vector<2x16x1xf32> to vector<2x1xf32>
        %57 = vector.shape_cast %56 : vector<2x1xf32> to vector<2x1x1xf32>
        %58 = vector.broadcast %57 : vector<2x1x1xf32> to vector<2x16x1xf32>
        %59 = arith.subf %55, %58 : vector<2x16x1xf32>
        %60 = math.exp %59 : vector<2x16x1xf32>
        %cst_34 = arith.constant dense<0.000000e+00> : vector<2x1xf32>
        %61 = vector.multi_reduction <add>, %60, %cst_34 [1] : vector<2x16x1xf32> to vector<2x1xf32>
        %62 = vector.shape_cast %61 : vector<2x1xf32> to vector<2x1x1xf32>
        %c0_35 = arith.constant 0 : index
        %c0_36 = arith.constant 0 : index
        %c0_37 = arith.constant 0 : index
        %63 = vector.load %arg1[%c0_35, %c0_36, %c0_37] : memref<2x16x8xbf16, #tpu.memory_space<vmem>>, vector<2x16x8xbf16>
        %64 = arith.extf %63 : vector<2x16x8xbf16> to vector<2x16x8xf32>
        %65 = vector.broadcast %60 : vector<2x16x1xf32> to vector<2x16x8xf32>
        %66 = arith.mulf %65, %64 : vector<2x16x8xf32>
        %cst_38 = arith.constant dense<0.000000e+00> : vector<2x8xf32>
        %67 = vector.multi_reduction <add>, %66, %cst_38 [1] : vector<2x16x8xf32> to vector<2x8xf32>
        %68 = vector.shape_cast %62 : vector<2x1x1xf32> to vector<2x1xf32>
        %69 = tpu.reciprocal %68 {approx = true} : vector<2x1xf32> -> vector<2x1xf32>
        %70 = vector.broadcast %69 : vector<2x1xf32> to vector<2x8xf32>
        %71 = arith.mulf %67, %70 : vector<2x8xf32>
        %72 = arith.truncf %71 : vector<2x8xf32> to vector<2x8xbf16>
        %73 = tpu.concatenate %72, %arg16 in 1 : vector<2x8xbf16>, vector<2x16xbf16> -> vector<2x24xbf16>
        %c0_39 = arith.constant 0 : index
        %c0_40 = arith.constant 0 : index
        %74 = vector.load %arg6[%c0_39, %c0_40] : memref<24x96xbf16, #tpu.memory_space<vmem>>, vector<24x96xbf16>
        %cst_41 = arith.constant dense<0.000000e+00> : vector<2x96xf32>
        %75 = tpu.matmul %73, %74, %cst_41 {dimension_numbers = #tpu.dot_dimension_numbers<[1], [0], [0], [1], [0, 0, 1, 1], [], []>} : vector<2x24xbf16>, vector<24x96xbf16>, vector<2x96xf32> -> vector<2x96xf32>
        %76 = vector.broadcast %8 : vector<1x96xf32> to vector<2x96xf32>
        %77 = arith.addf %75, %76 : vector<2x96xf32>
        %78 = vector.extract_strided_slice %77 {offsets = [0, 0], sizes = [2, 32], strides = [1, 1]} : vector<2x96xf32> to vector<2x32xf32>
        %79 = vector.extract_strided_slice %44 {offsets = [0, 32], sizes = [2, 32], strides = [1, 1]} : vector<2x128xf32> to vector<2x32xf32>
        %80 = arith.addf %78, %79 : vector<2x32xf32>
        %81 = arith.negf %80 : vector<2x32xf32>
        %82 = math.exp %81 : vector<2x32xf32>
        %cst_42 = arith.constant 1.000000e+00 : f32
        %83 = vector.broadcast %cst_42 : f32 to vector<2x32xf32>
        %84 = arith.addf %83, %82 : vector<2x32xf32>
        %85 = arith.divf %83, %84 : vector<2x32xf32>
        %86 = vector.extract_strided_slice %77 {offsets = [0, 32], sizes = [2, 32], strides = [1, 1]} : vector<2x96xf32> to vector<2x32xf32>
        %87 = vector.extract_strided_slice %44 {offsets = [0, 64], sizes = [2, 32], strides = [1, 1]} : vector<2x128xf32> to vector<2x32xf32>
        %88 = arith.addf %86, %87 : vector<2x32xf32>
        %89 = arith.negf %88 : vector<2x32xf32>
        %90 = math.exp %89 : vector<2x32xf32>
        %cst_43 = arith.constant 1.000000e+00 : f32
        %91 = vector.broadcast %cst_43 : f32 to vector<2x32xf32>
        %92 = arith.addf %91, %90 : vector<2x32xf32>
        %93 = arith.divf %91, %92 : vector<2x32xf32>
        %94 = vector.extract_strided_slice %77 {offsets = [0, 64], sizes = [2, 32], strides = [1, 1]} : vector<2x96xf32> to vector<2x32xf32>
        %95 = vector.extract_strided_slice %44 {offsets = [0, 96], sizes = [2, 32], strides = [1, 1]} : vector<2x128xf32> to vector<2x32xf32>
        %96 = arith.mulf %85, %95 : vector<2x32xf32>
        %97 = arith.addf %94, %96 : vector<2x32xf32>
        %98 = math.tanh %97 : vector<2x32xf32>
        %cst_44 = arith.constant 1.000000e+00 : f32
        %99 = vector.broadcast %cst_44 : f32 to vector<2x32xf32>
        %100 = arith.subf %99, %93 : vector<2x32xf32>
        %101 = arith.mulf %100, %98 : vector<2x32xf32>
        %102 = arith.mulf %93, %arg15 : vector<2x32xf32>
        %103 = arith.addf %101, %102 : vector<2x32xf32>
        %104 = arith.truncf %103 : vector<2x32xf32> to vector<2x32xbf16>
        %c0_45 = arith.constant 0 : index
        %c0_46 = arith.constant 0 : index
        %105 = vector.load %arg8[%c0_45, %c0_46] : memref<32x64xbf16, #tpu.memory_space<vmem>>, vector<32x64xbf16>
        %cst_47 = arith.constant dense<0.000000e+00> : vector<2x64xf32>
        %106 = tpu.matmul %104, %105, %cst_47 {dimension_numbers = #tpu.dot_dimension_numbers<[1], [0], [0], [1], [0, 0, 1, 1], [], []>} : vector<2x32xbf16>, vector<32x64xbf16>, vector<2x64xf32> -> vector<2x64xf32>
        %107 = vector.broadcast %9 : vector<1x64xf32> to vector<2x64xf32>
        %108 = arith.addf %106, %107 : vector<2x64xf32>
        %109 = arith.truncf %108 : vector<2x64xf32> to vector<2x64xbf16>
        %c0_48 = arith.constant 0 : index
        %c0_49 = arith.constant 0 : index
        %110 = vector.load %arg10[%c0_48, %c0_49] : memref<64x128xbf16, #tpu.memory_space<vmem>>, vector<64x128xbf16>
        %cst_50 = arith.constant dense<0.000000e+00> : vector<2x128xf32>
        %111 = tpu.matmul %109, %110, %cst_50 {dimension_numbers = #tpu.dot_dimension_numbers<[1], [0], [0], [1], [0, 0, 1, 1], [], []>} : vector<2x64xbf16>, vector<64x128xbf16>, vector<2x128xf32> -> vector<2x128xf32>
        %112 = vector.broadcast %10 : vector<1x128xf32> to vector<2x128xf32>
        %113 = arith.addf %111, %112 : vector<2x128xf32>
        %114 = vector.extract_strided_slice %113 {offsets = [0, 0], sizes = [2, 16], strides = [1, 1]} : vector<2x128xf32> to vector<2x16xf32>
        %cst_51 = arith.constant dense<0xFF800000> : vector<2xf32>
        %115 = vector.multi_reduction <maximumf>, %114, %cst_51 [1] : vector<2x16xf32> to vector<2xf32>
        %116 = vector.shape_cast %115 : vector<2xf32> to vector<2x1xf32>
        %117 = vector.broadcast %116 : vector<2x1xf32> to vector<2x16xf32>
        %118 = arith.cmpf oeq, %114, %117 : vector<2x16xf32>
        %c16_i32 = arith.constant 16 : i32
        %119 = vector.shape_cast %11 : vector<1x16xi32> to vector<1x16xi32>
        %120 = vector.broadcast %119 : vector<1x16xi32> to vector<2x16xi32>
        %121 = vector.broadcast %c16_i32 : i32 to vector<2x16xi32>
        %122 = arith.select %118, %120, %121 : vector<2x16xi1>, vector<2x16xi32>
        %cst_52 = arith.constant dense<2147483647> : vector<2xi32>
        %123 = vector.multi_reduction <minsi>, %122, %cst_52 [1] : vector<2x16xi32> to vector<2xi32>
        %124 = vector.shape_cast %123 : vector<2xi32> to vector<2x1xi32>
        %125 = vector.broadcast %11 : vector<1x16xi32> to vector<2x16xi32>
        %126 = vector.broadcast %124 : vector<2x1xi32> to vector<2x16xi32>
        %127 = arith.cmpi eq, %125, %126 : vector<2x16xi32>
        %128 = arith.extui %127 : vector<2x16xi1> to vector<2x16xi32>
        %129 = arith.sitofp %128 : vector<2x16xi32> to vector<2x16xf32>
        %130 = arith.truncf %129 : vector<2x16xf32> to vector<2x16xbf16>
        %c15_i32 = arith.constant 15 : i32
        %131 = vector.broadcast %c15_i32 : i32 to vector<2x1xi32>
        %132 = arith.cmpi eq, %124, %131 : vector<2x1xi32>
        %133 = arith.extui %132 : vector<2x1xi1> to vector<2x1xi32>
        %134 = arith.sitofp %133 : vector<2x1xi32> to vector<2x1xf32>
        %135 = arith.maximumf %arg17, %134 : vector<2x1xf32>
        scf.yield %103, %130, %135, %113 : vector<2x32xf32>, vector<2x16xbf16>, vector<2x1xf32>, vector<2x128xf32>
      } else {
        %cst_24 = arith.constant 0.000000e+00 : f32
        %40 = vector.broadcast %cst_24 : f32 to vector<2x128xf32>
        scf.yield %arg15, %arg16, %arg17, %40 : vector<2x32xf32>, vector<2x16xbf16>, vector<2x1xf32>, vector<2x128xf32>
      }
      %37 = vector.shape_cast %36#3 : vector<2x128xf32> to vector<1x2x128xf32>
      %38 = arith.index_cast %arg14 : i32 to index
      %c0_22 = arith.constant 0 : index
      %c0_23 = arith.constant 0 : index
      %39 = vector.load %arg12[%38, %c0_22, %c0_23] : memref<9x2x128xf32, #tpu.memory_space<vmem>>, vector<1x2x128xf32>
      tpu.vector_store %arg12[%38, %c0_22, %c0_23], %37 {strides = array<i32>} : memref<9x2x128xf32, #tpu.memory_space<vmem>>, vector<1x2x128xf32>,
      scf.yield %36#0, %36#1, %36#2 : vector<2x32xf32>, vector<2x16xbf16>, vector<2x1xf32>
    }
    %c9_i32_18 = arith.constant 9 : i32
    return
  }
  func.func @transform_0(%arg0: i32) -> (i32, i32, i32) {
    %c0_i32 = arith.constant 0 : i32
    %c0_i32_0 = arith.constant 0 : i32
    %c0_i32_1 = arith.constant 0 : i32
    return %arg0, %c0_i32, %c0_i32_0 : i32, i32, i32
  }
  func.func @transform_1(%arg0: i32) -> (i32, i32) {
    %c0_i32 = arith.constant 0 : i32
    %c0_i32_0 = arith.constant 0 : i32
    %c0_i32_1 = arith.constant 0 : i32
    return %c0_i32, %c0_i32_0 : i32, i32
  }
  func.func @transform_2(%arg0: i32) -> (i32, i32) {
    %c0_i32 = arith.constant 0 : i32
    %c0_i32_0 = arith.constant 0 : i32
    %c0_i32_1 = arith.constant 0 : i32
    return %c0_i32, %c0_i32_0 : i32, i32
  }
  func.func @transform_3(%arg0: i32) -> (i32, i32) {
    %c0_i32 = arith.constant 0 : i32
    %c0_i32_0 = arith.constant 0 : i32
    %c0_i32_1 = arith.constant 0 : i32
    return %c0_i32, %c0_i32_0 : i32, i32
  }
  func.func @transform_4(%arg0: i32) -> (i32, i32) {
    %c0_i32 = arith.constant 0 : i32
    %c0_i32_0 = arith.constant 0 : i32
    %c0_i32_1 = arith.constant 0 : i32
    return %c0_i32, %c0_i32_0 : i32, i32
  }
  func.func @transform_5(%arg0: i32) -> (i32, i32) {
    %c0_i32 = arith.constant 0 : i32
    %c0_i32_0 = arith.constant 0 : i32
    %c0_i32_1 = arith.constant 0 : i32
    return %c0_i32, %c0_i32_0 : i32, i32
  }
  func.func @transform_6(%arg0: i32) -> (i32, i32) {
    %c0_i32 = arith.constant 0 : i32
    %c0_i32_0 = arith.constant 0 : i32
    %c0_i32_1 = arith.constant 0 : i32
    return %c0_i32, %c0_i32_0 : i32, i32
  }
  func.func @transform_7(%arg0: i32) -> (i32, i32) {
    %c0_i32 = arith.constant 0 : i32
    %c0_i32_0 = arith.constant 0 : i32
    %c0_i32_1 = arith.constant 0 : i32
    return %c0_i32, %c0_i32_0 : i32, i32
  }
  func.func @transform_8(%arg0: i32) -> (i32, i32) {
    %c0_i32 = arith.constant 0 : i32
    %c0_i32_0 = arith.constant 0 : i32
    %c0_i32_1 = arith.constant 0 : i32
    return %c0_i32, %c0_i32_0 : i32, i32
  }
  func.func @transform_9(%arg0: i32) -> (i32, i32) {
    %c0_i32 = arith.constant 0 : i32
    %c0_i32_0 = arith.constant 0 : i32
    %c0_i32_1 = arith.constant 0 : i32
    return %c0_i32, %c0_i32_0 : i32, i32
  }
  func.func @transform_10(%arg0: i32) -> (i32, i32) {
    %c0_i32 = arith.constant 0 : i32
    %c0_i32_0 = arith.constant 0 : i32
    %c0_i32_1 = arith.constant 0 : i32
    return %c0_i32, %c0_i32_0 : i32, i32
  }
  func.func @transform_11(%arg0: i32) -> (i32, i32, i32) {
    %c0_i32 = arith.constant 0 : i32
    %c0_i32_0 = arith.constant 0 : i32
    %c0_i32_1 = arith.constant 0 : i32
    return %c0_i32, %arg0, %c0_i32_0 : i32, i32, i32
  }
}

</mosaic_0001>

<llo_original>
// kernel: tpu_custom_call.1
$region0: #{tpu_custom_call.1}
  #allocation0 [shape = 'u32[]', space=smem, size = 0x4, offset = 0x4, fixed_abs, tag = 'smem constant byte address 0x4 - core index']
  #allocation1 [shape = 'u32[72,128]{1,0:T(1,128)}', space=vmem, size = 0x9000, scoped, tag = 'internal scratch']
  #allocation2 [shape = 'bf16[2,16,32]{2,1,0:T(8,128)(2,1)}', space=vmem, size = 0x2000, scoped, tag = 'scratch operand']
  %s0 = inlined_call_operand.vmem [shape: bf16[2,16,8], index: 0, kind: input, shape index: {}]
  %s1 = inlined_call_operand.hbm [shape: bf16[8,32], index: 1, kind: input, shape index: {}]
  %s2 = inlined_call_operand.hbm [shape: bf16[32,128], index: 2, kind: input, shape index: {}]
  %s3 = inlined_call_operand.hbm [shape: f32[1,128], index: 3, kind: input, shape index: {}]
  %s4 = inlined_call_operand.vmem [shape: bf16[32,1], index: 4, kind: input, shape index: {}]
  %s5 = inlined_call_operand.vmem [shape: bf16[24,96], index: 5, kind: input, shape index: {}]
  %s6 = inlined_call_operand.vmem [shape: f32[1,96], index: 6, kind: input, shape index: {}]
  %s7 = inlined_call_operand.hbm [shape: bf16[32,64], index: 7, kind: input, shape index: {}]
  %s8 = inlined_call_operand.vmem [shape: f32[1,64], index: 8, kind: input, shape index: {}]
  %s9 = inlined_call_operand.vmem [shape: bf16[64,128], index: 9, kind: input, shape index: {}]
  %s10 = inlined_call_operand.vmem [shape: f32[1,128], index: 10, kind: input, shape index: {}]
  %s11 = inlined_call_operand.hbm [shape: f32[9,2,128], index: 11, kind: output, shape index: {}]
  %s12 = sld [smem:[#allocation0]]
  $region85: #{tpu_custom_call.1} parent=0
    _
  %s14 = ssub.s32 1, %s12
  %s15 = scalar_select 0, %s14, %s12
  $region1: #{tpu_custom_call.1} parent=0
    #allocation3 [shape = 'u8[2048]{0}', space=vmem, size = 0x800, scoped, tag = 'input window, operand 1, single buffered']
    #allocation4 [shape = 's32[1]{0}', space=sflag, size = 0x4, scoped, tag = 'scoped memory for tpu_custom_call.1']
    #allocation5 [shape = 's32[1]{0}', space=sflag, size = 0x4, scoped, tag = 'scoped memory for tpu_custom_call.1']
    #allocation6 [shape = 'u8[8192]{0}', space=vmem, size = 0x2000, scoped, tag = 'input window, operand 2, single buffered']
    #allocation7 [shape = 's32[1]{0}', space=sflag, size = 0x4, scoped, tag = 'scoped memory for tpu_custom_call.1']
    #allocation8 [shape = 'u8[512]{0}', space=vmem, size = 0x400, scoped, tag = 'input window, operand 3, single buffered']
    #allocation9 [shape = 'u8[8192]{0}', space=vmem, size = 0x2000, scoped, tag = 'input window, operand 7, single buffered']
    #allocation10 [shape = 's32[1]{0}', space=sflag, size = 0x4, scoped, tag = 'scoped memory for tpu_custom_call.1']
    #allocation11 [shape = 'u8[9216]{0}', space=vmem, size = 0x2400, scoped, tag = 'output window, operand 0, single buffered']
    %16 = vsyncpa [#allocation4], 0
    %17 = vsyncpa [#allocation7], 0
    %18 = vsyncpa [#allocation10], 0
    %19 = vsyncpa [#allocation5], 0
    // Predicated region
    $region2: #{tpu_custom_call.1} parent=1 // pred_check
      _
    $region3: #{tpu_custom_call.1} parent=1 // pred_check_branch
      %21 = sbr.rel (0) target = $region5
    $region4: #{tpu_custom_call.1} parent=1 // pred_region
      _
    $region5: #{tpu_custom_call.1} parent=1 // pred_fallthru
      _
    // Predicated region
    $region6: #{tpu_custom_call.1} parent=1 // pred_check
      _
    $region7: #{tpu_custom_call.1} parent=1 // pred_check_branch
      %23 = sbr.rel (0) target = $region9
    $region8: #{tpu_custom_call.1} parent=1 // pred_region
      %25 = vsyncadd [#allocation4], 0
      %s27 = sshll.u32 %s1, 4
      %s28 = int_to_ptr.hbm [resolvable:$true] %s27
      %s29 = sshll.u32 [#allocation3], 4
      %s30 = int_to_ptr.vmem [resolvable:$true] %s29
      %32 = dma.hbm_to_vmem [thread:$0]  %s28, 64, %s30, [#allocation4]
    $region9: #{tpu_custom_call.1} parent=1 // pred_fallthru
      _
    // Predicated region
    $region10: #{tpu_custom_call.1} parent=1 // pred_check
      _
    $region11: #{tpu_custom_call.1} parent=1 // pred_check_branch
      %34 = sbr.rel (0) target = $region13
    $region12: #{tpu_custom_call.1} parent=1 // pred_region
      %36 = vsyncadd [#allocation7], 0
      %s37 = sshll.u32 %s2, 4
      %s38 = int_to_ptr.hbm [resolvable:$true] %s37
      %s39 = sshll.u32 [#allocation6], 4
      %s40 = int_to_ptr.vmem [resolvable:$true] %s39
      %45 = dma.hbm_to_vmem [thread:$0]  %s38, 256, %s40, [#allocation7], 64, 64, 4
    $region13: #{tpu_custom_call.1} parent=1 // pred_fallthru
      _
    // Predicated region
    $region14: #{tpu_custom_call.1} parent=1 // pred_check
      _
    $region15: #{tpu_custom_call.1} parent=1 // pred_check_branch
      %47 = sbr.rel (0) target = $region17
    $region16: #{tpu_custom_call.1} parent=1 // pred_region
      %49 = vsyncadd [#allocation7], 0
      %s51 = sshll.u32 %s3, 4
      %s52 = int_to_ptr.hbm [resolvable:$true] %s51
      %s53 = sshll.u32 [#allocation8], 4
      %s54 = int_to_ptr.vmem [resolvable:$true] %s53
      %56 = dma.hbm_to_vmem [thread:$0]  %s52, 16, %s54, [#allocation7]
    $region17: #{tpu_custom_call.1} parent=1 // pred_fallthru
      _
    // Predicated region
    $region18: #{tpu_custom_call.1} parent=1 // pred_check
      _
    $region19: #{tpu_custom_call.1} parent=1 // pred_check_branch
      %58 = sbr.rel (0) target = $region21
    $region20: #{tpu_custom_call.1} parent=1 // pred_region
      _
    $region21: #{tpu_custom_call.1} parent=1 // pred_fallthru
      _
    // Predicated region
    $region22: #{tpu_custom_call.1} parent=1 // pred_check
      _
    $region23: #{tpu_custom_call.1} parent=1 // pred_check_branch
      %60 = sbr.rel (0) target = $region25
    $region24: #{tpu_custom_call.1} parent=1 // pred_region
      _
    $region25: #{tpu_custom_call.1} parent=1 // pred_fallthru
      _
    // Predicated region
    $region26: #{tpu_custom_call.1} parent=1 // pred_check
      _
    $region27: #{tpu_custom_call.1} parent=1 // pred_check_branch
      %62 = sbr.rel (0) target = $region29
    $region28: #{tpu_custom_call.1} parent=1 // pred_region
      _
    $region29: #{tpu_custom_call.1} parent=1 // pred_fallthru
      _
    // Predicated region
    $region30: #{tpu_custom_call.1} parent=1 // pred_check
      _
    $region31: #{tpu_custom_call.1} parent=1 // pred_check_branch
      %64 = sbr.rel (0) target = $region33
    $region32: #{tpu_custom_call.1} parent=1 // pred_region
      %66 = vsyncadd [#allocation10], 0
      %s67 = sshll.u32 %s7, 4
      %s68 = int_to_ptr.hbm [resolvable:$true] %s67
      %s69 = sshll.u32 [#allocation9], 4
      %s70 = int_to_ptr.vmem [resolvable:$true] %s69
      %75 = dma.hbm_to_vmem [thread:$0]  %s68, 256, %s70, [#allocation10], 64, 64, 4
    $region33: #{tpu_custom_call.1} parent=1 // pred_fallthru
      _
    // Predicated region
    $region34: #{tpu_custom_call.1} parent=1 // pred_check
      _
    $region35: #{tpu_custom_call.1} parent=1 // pred_check_branch
      %77 = sbr.rel (0) target = $region37
    $region36: #{tpu_custom_call.1} parent=1 // pred_region
      _
    $region37: #{tpu_custom_call.1} parent=1 // pred_fallthru
      _
    // Predicated region
    $region38: #{tpu_custom_call.1} parent=1 // pred_check
      _
    $region39: #{tpu_custom_call.1} parent=1 // pred_check_branch
      %79 = sbr.rel (0) target = $region41
    $region40: #{tpu_custom_call.1} parent=1 // pred_region
      _
    $region41: #{tpu_custom_call.1} parent=1 // pred_fallthru
      _
    // Predicated region
    $region42: #{tpu_custom_call.1} parent=1 // pred_check
      _
    $region43: #{tpu_custom_call.1} parent=1 // pred_check_branch
      %81 = sbr.rel (0) target = $region45
    $region44: #{tpu_custom_call.1} parent=1 // pred_region
      _
    $region45: #{tpu_custom_call.1} parent=1 // pred_fallthru
      _
    // Predicated region
    $region46: #{tpu_custom_call.1} parent=1 // pred_check
      _
    $region47: #{tpu_custom_call.1} parent=1 // pred_check_branch
      %83 = sbr.rel (0) target = $region49
    $region48: #{tpu_custom_call.1} parent=1 // pred_region
      %85 = dma.done [#allocation4], 64
    $region49: #{tpu_custom_call.1} parent=1 // pred_fallthru
      _
    // Predicated region
    $region50: #{tpu_custom_call.1} parent=1 // pred_check
      _
    $region51: #{tpu_custom_call.1} parent=1 // pred_check_branch
      %87 = sbr.rel (0) target = $region53
    $region52: #{tpu_custom_call.1} parent=1 // pred_region
      %89 = dma.done [#allocation7], 256
    $region53: #{tpu_custom_call.1} parent=1 // pred_fallthru
      _
    // Predicated region
    $region54: #{tpu_custom_call.1} parent=1 // pred_check
      _
    $region55: #{tpu_custom_call.1} parent=1 // pred_check_branch
      %91 = sbr.rel (0) target = $region57
    $region56: #{tpu_custom_call.1} parent=1 // pred_region
      %93 = dma.done [#allocation7], 16
    $region57: #{tpu_custom_call.1} parent=1 // pred_fallthru
      _
    // Predicated region
    $region58: #{tpu_custom_call.1} parent=1 // pred_check
      _
    $region59: #{tpu_custom_call.1} parent=1 // pred_check_branch
      %95 = sbr.rel (0) target = $region61
    $region60: #{tpu_custom_call.1} parent=1 // pred_region
      %97 = dma.done [#allocation10], 256
    $region61: #{tpu_custom_call.1} parent=1 // pred_fallthru
      _
    %v99 = vld [vmem:[%s0] sm:$0xf]
    %v100 = vld [vmem:[%s0 + $0x4] sm:$0xf]
    %v101 = vld [vmem:[%s0 + $0x8] sm:$0xf]
    %v102 = vld [vmem:[%s0 + $0xc] sm:$0xf]
    %v103 = vld [vmem:[#allocation3] sm:$0xf]
    %v108 = vunpack.c.l.b16 %v99
    %v109 = vunpack.c.l.b16 %v100
    %v110 = vunpack.c.l.b16 %v101
    %v111 = vunpack.c.l.b16 %v102
    %v112 = vpack.c.b16 %v109, %v108
    %v113 = vpack.c.b16 %v111, %v110
    %vm114 = vcmask 64512
    %v116 = vsel %vm114, %v112, 0
    %v119 = vsel %vm114, %v113, 0
    %vm121 = vcmask 1043456
    %v123 = vsel %vm121, %v103, 0
    %125 = vmatpush.bf16.msra.mxu0 0
    %126 = vmatpush.bf16.msra.mxu0 0
    %127 = vmatpush.bf16.msra.mxu0 0
    %128 = vmatpush.bf16.msra.mxu0 0
    %129 = vmatpush.bf16.msra.mxu0 0
    %130 = vmatpush.bf16.msra.mxu0 0
    %131 = vmatpush.bf16.msra.mxu0 0
    %132 = vmatpush.bf16.msra.mxu0 %v123
    %133 = vmatmul.bf16.gmra.mxu0 %v116
    %v134 = vpop.f32.mrf.mxu0
    %v135 = vadd.f32 0.0, %v134
    %v136 = vpop.f32.mrf.mxu0
    %v137 = vadd.f32 0.0, %v136
    %138 = vmatmul.bf16.gmra.mxu0 %v119
    %v139 = vpop.f32.mrf.mxu0
    %v140 = vadd.f32 0.0, %v139
    %v141 = vpop.f32.mrf.mxu0
    %v142 = vadd.f32 0.0, %v141
    %143 = vdwg.mxu0
    %v144 = vpack.c.bf16 %v135, %v135
    %v145 = vpack.c.bf16 %v137, %v137
    %v146 = vpack.c.bf16 %v140, %v140
    %v147 = vpack.c.bf16 %v142, %v142
    %vm148 = vcmask 257024
    %149 = vst.msk [vmem:[#allocation2] sm:$0xf] %vm148, %v144
    %150 = vst.msk [vmem:[#allocation2 + $0x4] sm:$0xf] %vm148, %v145
    %151 = vst.msk [vmem:[#allocation2 + $0x8] sm:$0xf] %vm148, %v146
    %152 = vst.msk [vmem:[#allocation2 + $0xc] sm:$0xf] %vm148, %v147
    %v153 = vld [vmem:[#allocation8] sm:$0x1]
    %v154 = vld [vmem:[%s6] sm:$0x1]
    %v155 = vld [vmem:[%s8] sm:$0x1]
    %v156 = vld [vmem:[%s10] sm:$0x1]
    %v157 = vlaneseq
    %v158 = vand.u32 %v157, 127
    %v159 = vlaneseq
    %v160 = vshrl.u32 %v159, 7
    %s161 = smul.u32 0, 2
    %s162 = ssub.s32 2, %s161
    %v163 = vstv %s162
    %vm164 = vcmp.ge.s32.totalorder %v160, %v163
    %v165 = vsel %vm164, 1, 0
    %v166 = vcvt.s32.f32 %v165
    %vm167 = vcmp.eq.s32.totalorder %v158, 0
    %v168 = vsel %vm167, 1, 0
    %v169 = vcvt.s32.f32 %v168
    %v170 = vpack.c.bf16 %v169, %v169
    loop: start=0, step=1, limit=9
    $region62: #{tpu_custom_call.1} parent=1 // loop_pre_header
      _
    $region63: #{tpu_custom_call.1} parent=1 // loop_header
      %s172 = sphi 0, %s176
      %p173 = scmp.ge.s32.totalorder %s172, 9
      %v177 = vphi 0.0, %v662
      %v178 = vphi %v170, %v663
      %v179 = vphi %v166, %v664
    $region64: #{tpu_custom_call.1} parent=1 // loop_header_branch
      %175 = sbr.rel (%p173) target = $region68
    $region65: #{tpu_custom_call.1} parent=1 // loop_body
      %vm180 = vcmask 1041408
      %v181 = vsel %vm180, %v179, inf
      %v182 = vrot.slane %v181, 4
      %v183 = vmin.f32 %v181, %v182
      %v184 = vrot.slane %v183, 2
      %v185 = vmin.f32 %v183, %v184
      %v186 = vrot.slane %v185, 1
      %v187 = vmin.f32 %v185, %v186
      %s188 = vtos %v187
      %p189 = scmp.lt.f32.partialorder %s188, 0.5
      // Predicated region
      $region69: #{tpu_custom_call.1} parent=65 // pred_check
        %p190 = pneg %p189
      $region70: #{tpu_custom_call.1} parent=65 // pred_check_branch
        %192 = sbr.rel (%p190) target = $region72
      $region71: #{tpu_custom_call.1} parent=65 // pred_region
        %v193 = vpack.c.bf16 %v177, %v177
        %v194 = vld [vmem:[#allocation6] sm:$0xf]
        %v195 = vld [vmem:[#allocation6 + $0x4] sm:$0xf]
        %v196 = vld [vmem:[#allocation6 + $0x8] sm:$0xf]
        %v197 = vld [vmem:[#allocation6 + $0xc] sm:$0xf]
        %v199 = vperm.slane %v153, 0
        %202 = vrot.lane.b32.xlu0 %v193, 96
        %v203 = vpop.permute.xlu0 %202
        %v208 = vunpack.c.l.b16 %v194
        %v209 = vunpack.c.l.b16 %v195
        %v210 = vunpack.c.l.b16 %v196
        %v211 = vunpack.c.l.b16 %v197
        %v212 = vpack.c.b16 %v209, %v208
        %v213 = vpack.c.b16 %v211, %v210
        %vm216 = vcmask 261120
        %v218 = vsel %vm216, %v203, 0
        %220 = vmatpush.bf16.msra.mxu0 0
        %221 = vmatpush.bf16.msra.mxu0 0
        %222 = vmatpush.bf16.msra.mxu0 0
        %223 = vmatpush.bf16.msra.mxu0 0
        %224 = vmatpush.bf16.msra.mxu0 0
        %225 = vmatpush.bf16.msra.mxu0 0
        %226 = vmatpush.bf16.msra.mxu0 %v213
        %227 = vmatpush.bf16.msra.mxu0 %v212
        %228 = vmatmul.bf16.gmra.mxu0 %v218
        %v229 = vpop.f32.mrf.mxu0
        %v230 = vadd.f32 %v199, %v229
        %v231 = vpop.f32.mrf.mxu0
        %232 = vdwg.mxu0
        %v233 = vld [vmem:[#allocation2] sm:$0xf]
        %v234 = vld [vmem:[#allocation2 + $0x4] sm:$0xf]
        %v235 = vld [vmem:[#allocation2 + $0x8] sm:$0xf]
        %v236 = vld [vmem:[#allocation2 + $0xc] sm:$0xf]
        %v238 = vrot.slane %v230, 1
        %v240 = vpack.c.bf16 %v230, %v230
        %v241 = vpack.c.bf16 %v238, %v238
        %v243 = vpack.i.b16 %v240, %v240
        %v245 = vperm.slane %v243, 0
        %v247 = vpack.i.b16 %v241, %v241
        %v249 = vperm.slane %v247, 0
        %v250 = vunpack.c.l.bf16 %v233
        %v251 = vunpack.c.l.bf16 %v234
        %v252 = vunpack.c.l.bf16 %v235
        %v253 = vunpack.c.l.bf16 %v236
        %v254 = vunpack.c.l.bf16 %v245
        %v255 = vunpack.c.l.bf16 %v249
        %v256 = vadd.f32 %v250, %v254
        %v257 = vadd.f32 %v251, %v254
        %v258 = vadd.f32 %v252, %v255
        %v259 = vadd.f32 %v253, %v255
        %v260 = vpack.c.bf16 %v256, %v256
        %v261 = vpack.c.bf16 %v257, %v257
        %v262 = vpack.c.bf16 %v258, %v258
        %v263 = vpack.c.bf16 %v259, %v259
        %v264 = vunpack.c.l.bf16 %v260
        %v265 = vunpack.c.l.bf16 %v261
        %v266 = vunpack.c.l.bf16 %v262
        %v267 = vunpack.c.l.bf16 %v263
        %v268 = vtanh.pop %v264
        %v269 = vtanh.pop %v265
        %v270 = vtanh.pop %v266
        %v271 = vtanh.pop %v267
        %v272 = vpack.c.bf16 %v268, %v268
        %v273 = vpack.c.bf16 %v269, %v269
        %v274 = vpack.c.bf16 %v270, %v270
        %v275 = vpack.c.bf16 %v271, %v271
        %v276 = vld [vmem:[%s4] sm:$0xf]
        %v277 = vld [vmem:[%s4 + $0x4] sm:$0xf]
        %v278 = vld [vmem:[%s4 + $0x8] sm:$0xf]
        %v279 = vld [vmem:[%s4 + $0xc] sm:$0xf]
        %v284 = vunpack.c.l.b16 %v272
        %v285 = vunpack.c.l.b16 %v273
        %v286 = vunpack.c.l.b16 %v274
        %v287 = vunpack.c.l.b16 %v275
        %v288 = vpack.c.b16 %v285, %v284
        %v289 = vpack.c.b16 %v287, %v286
        %v294 = vunpack.c.l.b16 %v276
        %v295 = vunpack.c.l.b16 %v277
        %v296 = vunpack.c.l.b16 %v278
        %v297 = vunpack.c.l.b16 %v279
        %v298 = vpack.c.b16 %v295, %v294
        %v299 = vpack.c.b16 %v297, %v296
        %v303 = vsel %vm216, %v288, 0
        %v306 = vsel %vm216, %v289, 0
        %308 = vmatpush.bf16.msra.mxu0 0
        %309 = vmatpush.bf16.msra.mxu0 0
        %310 = vmatpush.bf16.msra.mxu0 0
        %311 = vmatpush.bf16.msra.mxu0 0
        %312 = vmatpush.bf16.msra.mxu0 0
        %313 = vmatpush.bf16.msra.mxu0 0
        %314 = vmatpush.bf16.msra.mxu0 %v299
        %315 = vmatpush.bf16.msra.mxu0 %v298
        %316 = vmatmul.bf16.gmra.mxu0 %v303
        %v317 = vpop.f32.mrf.mxu0
        %v318 = vadd.f32 0.0, %v317
        %v319 = vpop.f32.mrf.mxu0
        %v320 = vadd.f32 0.0, %v319
        %321 = vmatmul.bf16.gmra.mxu0 %v306
        %v322 = vpop.f32.mrf.mxu0
        %v323 = vadd.f32 0.0, %v322
        %v324 = vpop.f32.mrf.mxu0
        %v325 = vadd.f32 0.0, %v324
        %326 = vdwg.mxu0
        %vm327 = vcmask 7168
        %v328 = vsel %vm327, %v318, -inf
        %v329 = vsel %vm327, %v320, -inf
        %v330 = vmax.f32 %v328, %v329
        %v331 = vrot.slane %v330, 4
        %v332 = vmax.f32 %v330, %v331
        %v333 = vrot.slane %v332, 2
        %v334 = vmax.f32 %v332, %v333
        %v335 = vrot.slane %v334, 1
        %v336 = vmax.f32 %v334, %v335
        %v337 = vsel %vm327, %v323, -inf
        %v338 = vsel %vm327, %v325, -inf
        %v339 = vmax.f32 %v337, %v338
        %v340 = vrot.slane %v339, 4
        %v341 = vmax.f32 %v339, %v340
        %v342 = vrot.slane %v341, 2
        %v343 = vmax.f32 %v341, %v342
        %v344 = vrot.slane %v343, 1
        %v345 = vmax.f32 %v343, %v344
        %v346 = vsub.f32 %v318, %v336
        %v347 = vsub.f32 %v320, %v336
        %v348 = vsub.f32 %v323, %v345
        %v349 = vsub.f32 %v325, %v345
        %v350 = vmul.f32 %v346, 1.442695
        %v351 = vpow.pop %v350
        %v352 = vmul.f32 %v347, 1.442695
        %v353 = vpow.pop %v352
        %v354 = vmul.f32 %v348, 1.442695
        %v355 = vpow.pop %v354
        %v356 = vmul.f32 %v349, 1.442695
        %v357 = vpow.pop %v356
        %v358 = vsel %vm327, %v351, 0.0
        %v359 = vsel %vm327, %v353, 0.0
        %v360 = vadd.f32 %v358, %v359
        %v361 = vrot.slane %v360, 4
        %v362 = vadd.f32 %v360, %v361
        %v363 = vrot.slane %v362, 2
        %v364 = vadd.f32 %v362, %v363
        %v365 = vrot.slane %v364, 1
        %v366 = vadd.f32 %v364, %v365
        %v367 = vsel %vm327, %v355, 0.0
        %v368 = vsel %vm327, %v357, 0.0
        %v369 = vadd.f32 %v367, %v368
        %v370 = vrot.slane %v369, 4
        %v371 = vadd.f32 %v369, %v370
        %v372 = vrot.slane %v371, 2
        %v373 = vadd.f32 %v371, %v372
        %v374 = vrot.slane %v373, 1
        %v375 = vadd.f32 %v373, %v374
        %v376 = vld [vmem:[%s0] sm:$0xf]
        %v377 = vld [vmem:[%s0 + $0x4] sm:$0xf]
        %v378 = vld [vmem:[%s0 + $0x8] sm:$0xf]
        %v379 = vld [vmem:[%s0 + $0xc] sm:$0xf]
        %v380 = vunpack.c.l.bf16 %v376
        %v381 = vunpack.c.l.bf16 %v377
        %v382 = vunpack.c.l.bf16 %v378
        %v383 = vunpack.c.l.bf16 %v379
        %385 = vset.pattern.permute.xlu0 0
        %386 = vperm.xlu0 %385, %v351
        %v387 = vpop.permute.xlu0 %386
        %390 = vset.pattern.permute.xlu0 0
        %391 = vperm.xlu0 %390, %v353
        %v392 = vpop.permute.xlu0 %391
        %395 = vset.pattern.permute.xlu0 0
        %396 = vperm.xlu0 %395, %v355
        %v397 = vpop.permute.xlu0 %396
        %400 = vset.pattern.permute.xlu0 0
        %401 = vperm.xlu0 %400, %v357
        %v402 = vpop.permute.xlu0 %401
        %v404 = vmul.f32 %v387, %v380
        %v405 = vmul.f32 %v392, %v381
        %v406 = vmul.f32 %v397, %v382
        %v407 = vmul.f32 %v402, %v383
        %v408 = vsel %vm114, %v404, 0.0
        %v409 = vsel %vm114, %v405, 0.0
        %v410 = vadd.f32 %v408, %v409
        %v411 = vrot.slane %v410, 4
        %v412 = vadd.f32 %v410, %v411
        %v413 = vrot.slane %v412, 2
        %v414 = vadd.f32 %v412, %v413
        %v415 = vrot.slane %v414, 1
        %v416 = vadd.f32 %v414, %v415
        %v417 = vsel %vm114, %v406, 0.0
        %v418 = vsel %vm114, %v407, 0.0
        %v419 = vadd.f32 %v417, %v418
        %v420 = vrot.slane %v419, 4
        %v421 = vadd.f32 %v419, %v420
        %v422 = vrot.slane %v421, 2
        %v423 = vadd.f32 %v421, %v422
        %v424 = vrot.slane %v423, 1
        %v425 = vadd.f32 %v423, %v424
        %v426 = vrcp.pop %v366
        %v427 = vrcp.pop %v375
        %429 = vset.pattern.permute.xlu0 0
        %430 = vperm.xlu0 %429, %v426
        %v431 = vpop.permute.xlu0 %430
        %434 = vset.pattern.permute.xlu0 0
        %435 = vperm.xlu0 %434, %v427
        %v436 = vpop.permute.xlu0 %435
        %v438 = vmul.f32 %v416, %v431
        %v439 = vmul.f32 %v425, %v436
        %v440 = vpack.c.bf16 %v438, %v438
        %v441 = vpack.c.bf16 %v439, %v439
        %v444 = vperm.slane %v440, 0
        %v445 = vperm.slane %v441, 0
        %v446 = vunpack.c.l.b16 %v444
        %v447 = vunpack.c.l.b16 %v445
        %vm448 = vcmask 1041409
        %v449 = vsel %vm448, %v447, %v446
        %v450 = vpack.c.b16 %v449, %v449
        %v452 = vunpack.c.l.b16 %v178
        %v453 = vpack.c.b16 %v452, %v452
        %454 = vrot.lane.b32.xlu0 %v453, 8
        %v455 = vpop.permute.xlu0 %454
        %v458 = vsel %vm114, %v450, %v455
        %v459 = vld [vmem:[%s5] sm:$0xf]
        %v460 = vld [vmem:[%s5 + $0x4] sm:$0xf]
        %v461 = vld [vmem:[%s5 + $0x8] sm:$0xf]
        %v463 = vperm.slane %v154, 0
        %v468 = vunpack.c.l.b16 %v459
        %v469 = vunpack.c.l.b16 %v460
        %v470 = vunpack.c.l.b16 %v461
        %v471 = vpack.c.b16 %v469, %v468
        %v472 = vpack.c.b16 %v470, %v470
        %vm474 = vcmask 195584
        %v475 = vsel %vm474, %v458, 0
        %v478 = vsel %vm121, %v472, 0
        %480 = vmatpush.bf16.msra.mxu0 0
        %481 = vmatpush.bf16.msra.mxu0 0
        %482 = vmatpush.bf16.msra.mxu0 0
        %483 = vmatpush.bf16.msra.mxu0 0
        %484 = vmatpush.bf16.msra.mxu0 0
        %485 = vmatpush.bf16.msra.mxu0 0
        %486 = vmatpush.bf16.msra.mxu0 %v478
        %487 = vmatpush.bf16.msra.mxu0 %v471
        %488 = vmatmul.bf16.gmra.mxu0 %v475
        %v489 = vpop.f32.mrf.mxu0
        %v490 = vadd.f32 %v463, %v489
        %v491 = vpop.f32.mrf.mxu0
        %492 = vdwg.mxu0
        %493 = vrot.lane.b32.xlu0 %v230, 96
        %v494 = vpop.permute.xlu0 %493
        %v496 = vadd.f32 %v490, %v494
        %v497 = vxor.u32 %v496, 2147483648
        %v498 = vmul.f32 %v497, 1.442695
        %v499 = vpow.pop %v498
        %v500 = vadd.f32 %v499, 1.0
        %v501 = vrcp.pop %v500
        %v502 = vmul.f32 %v500, %v501
        %v503 = vsub.f32 1.0, %v502
        %v504 = vmul.f32 %v501, %v503
        %v505 = vadd.f32 %v501, %v504
        %vm506 = vweird.f32 %v500
        %vm507 = vweird.f32 %v501
        %vm508 = vmor %vm506, %vm507
        %v509 = vsel %vm508, %v501, %v505
        %v510 = vand.u32 2147483647, %v500
        %vm511 = vcmp.eq.f32.partialorder %v510, 8.507059e+37
        %v512 = vand.u32 %v500, 2147483648
        %v513 = vor.u32 1.1754944e-38, %v512
        %v514 = vsel %vm511, %v513, %v509
        %v515 = vmul.f32 1.0, %v514
        %516 = vrot.lane.b32.xlu0 %v230, 32
        %v517 = vpop.permute.xlu0 %516
        %v519 = vmul.f32 %v515, %v517
        %521 = vrot.lane.b32.xlu0 %v519, 64
        %v522 = vpop.permute.xlu0 %521
        %v524 = vadd.f32 %v490, %v522
        %v525 = vtanh.pop %v524
        %v526 = vsub.f32 1.0, %v515
        %528 = vrot.lane.b32.xlu0 %v525, 96
        %v529 = vpop.permute.xlu0 %528
        %v531 = vmul.f32 %v526, %v529
        %v532 = vmul.f32 %v515, %v177
        %v533 = vadd.f32 %v531, %v532
        %v534 = vpack.c.bf16 %v533, %v533
        %v535 = vld [vmem:[#allocation9] sm:$0xf]
        %v536 = vld [vmem:[#allocation9 + $0x4] sm:$0xf]
        %v537 = vld [vmem:[#allocation9 + $0x8] sm:$0xf]
        %v538 = vld [vmem:[#allocation9 + $0xc] sm:$0xf]
        %v540 = vperm.slane %v155, 0
        %543 = vrot.lane.b32.xlu0 %v534, 96
        %v544 = vpop.permute.xlu0 %543
        %v549 = vunpack.c.l.b16 %v535
        %v550 = vunpack.c.l.b16 %v536
        %v551 = vunpack.c.l.b16 %v537
        %v552 = vunpack.c.l.b16 %v538
        %v553 = vpack.c.b16 %v550, %v549
        %v554 = vpack.c.b16 %v552, %v551
        %v558 = vsel %vm216, %v544, 0
        %560 = vmatpush.bf16.msra.mxu0 0
        %561 = vmatpush.bf16.msra.mxu0 0
        %562 = vmatpush.bf16.msra.mxu0 0
        %563 = vmatpush.bf16.msra.mxu0 0
        %564 = vmatpush.bf16.msra.mxu0 0
        %565 = vmatpush.bf16.msra.mxu0 0
        %566 = vmatpush.bf16.msra.mxu0 %v554
        %567 = vmatpush.bf16.msra.mxu0 %v553
        %568 = vmatmul.bf16.gmra.mxu0 %v558
        %v569 = vpop.f32.mrf.mxu0
        %v570 = vadd.f32 %v540, %v569
        %v571 = vpop.f32.mrf.mxu0
        %572 = vdwg.mxu0
        %v573 = vpack.c.bf16 %v570, %v570
        %v574 = vld [vmem:[%s9] sm:$0xf]
        %v575 = vld [vmem:[%s9 + $0x4] sm:$0xf]
        %v576 = vld [vmem:[%s9 + $0x8] sm:$0xf]
        %v577 = vld [vmem:[%s9 + $0xc] sm:$0xf]
        %v578 = vld [vmem:[%s9 + $0x10] sm:$0xf]
        %v579 = vld [vmem:[%s9 + $0x14] sm:$0xf]
        %v580 = vld [vmem:[%s9 + $0x18] sm:$0xf]
        %v581 = vld [vmem:[%s9 + $0x1c] sm:$0xf]
        %v583 = vperm.slane %v156, 0
        %v593 = vunpack.c.l.b16 %v574
        %v594 = vunpack.c.l.b16 %v575
        %v595 = vunpack.c.l.b16 %v576
        %v596 = vunpack.c.l.b16 %v577
        %v597 = vunpack.c.l.b16 %v578
        %v598 = vunpack.c.l.b16 %v579
        %v599 = vunpack.c.l.b16 %v580
        %v600 = vunpack.c.l.b16 %v581
        %v601 = vpack.c.b16 %v594, %v593
        %v602 = vpack.c.b16 %v596, %v595
        %v603 = vpack.c.b16 %v598, %v597
        %v604 = vpack.c.b16 %v600, %v599
        %vm609 = vcmask 523264
        %v611 = vsel %vm609, %v573, 0
        %613 = vmatpush.bf16.msra.mxu0 0
        %614 = vmatpush.bf16.msra.mxu0 0
        %615 = vmatpush.bf16.msra.mxu0 0
        %616 = vmatpush.bf16.msra.mxu0 0
        %617 = vmatpush.bf16.msra.mxu0 %v604
        %618 = vmatpush.bf16.msra.mxu0 %v603
        %619 = vmatpush.bf16.msra.mxu0 %v602
        %620 = vmatpush.bf16.msra.mxu0 %v601
        %621 = vmatmul.bf16.gmra.mxu0 %v611
        %v622 = vpop.f32.mrf.mxu0
        %v623 = vadd.f32 %v583, %v622
        %v624 = vpop.f32.mrf.mxu0
        %625 = vdwg.mxu0
        %vm626 = vcmask 123904
        %v627 = vsel %vm626, %v623, -inf
        %628 = vmax.xlane.f32.xlu0 %v627
        %v629 = vpop.xlane.xlu0 %628
        %vm630 = vcmp.eq.f32.partialorder %v623, %v629
        %v631 = vsel %vm630, %v158, 16
        %v632 = vsel %vm626, %v631, 2147483647
        %v633 = vand.u32 %v632, 65535
        %v634 = vshra.s32 %v632, 16
        %v635 = vcvt.s32.f32 %v633
        %v636 = vcvt.s32.f32 %v634
        %637 = vmin.xlane.f32.xlu0 %v636
        %v638 = vpop.xlane.xlu0 %637
        %vm639 = vcmp.eq.f32.partialorder %v636, %v638
        %v640 = vsel %vm639, %v635, inf
        %641 = vmin.xlane.f32.xlu0 %v640
        %v642 = vpop.xlane.xlu0 %641
        %v643 = vcvt.f32.s32 %v642
        %v644 = vcvt.f32.s32 %v638
        %v645 = vshll.u32 %v644, 16
        %v646 = vadd.s32 %v645, %v643
        %vm647 = vcmp.eq.s32.totalorder %v158, %v646
        %v648 = vsel %vm647, 1, 0
        %v649 = vcvt.s32.f32 %v648
        %v650 = vpack.c.bf16 %v649, %v649
        %vm651 = vcmp.eq.s32.totalorder %v646, 15
        %v652 = vsel %vm651, 1, 0
        %v653 = vcvt.s32.f32 %v652
        %v654 = vmax.f32 %v179, %v653
      $region72: #{tpu_custom_call.1} parent=65 // pred_fallthru
        %v655 = vphi 0, %v533
        %v656 = vphi 0, %v650
        %v657 = vphi 0, %v654
        %v658 = vphi 0, %v623
      %p659 = pneg %p189
      // Predicated region
      $region73: #{tpu_custom_call.1} parent=65 // pred_check
        _
      $region74: #{tpu_custom_call.1} parent=65 // pred_check_branch
        %661 = sbr.rel (%p189) target = $region76
      $region75: #{tpu_custom_call.1} parent=65 // pred_region
        _
      $region76: #{tpu_custom_call.1} parent=65 // pred_fallthru
        %v662 = vphi %v655, %v177
        %v663 = vphi %v656, %v178
        %v664 = vphi %v657, %v179
        %v665 = vphi %v658, 0.0
      %s666 = smul.u32 %s172, 2
      %s667 = scalar_lea.vmem [#allocation11], %s666
      %668 = vst [vmem:[%s667] sm:$0x3] %v665
    $region66: #{tpu_custom_call.1} parent=1 // loop_footer
      %s176 = sadd.s32 1, %s172
    $region67: #{tpu_custom_call.1} parent=1 // loop_footer_branch
      %171 = sbr.rel target = $region63
    $region68: #{tpu_custom_call.1} parent=1 // loop_exit
      _
    // Predicated region
    $region77: #{tpu_custom_call.1} parent=1 // pred_check
      _
    $region78: #{tpu_custom_call.1} parent=1 // pred_check_branch
      %670 = sbr.rel (0) target = $region80
    $region79: #{tpu_custom_call.1} parent=1 // pred_region
      %672 = vsyncadd [#allocation5], 0
      %s673 = sshll.u32 [#allocation11], 4
      %s674 = int_to_ptr.vmem [resolvable:$true] %s673
      %s675 = sshll.u32 %s11, 4
      %s676 = int_to_ptr.hbm [resolvable:$true] %s675
      %681 = dma.vmem_to_hbm [thread:$0]  %s674, 288, %s676, [#allocation5], 32, 32, 2
    $region80: #{tpu_custom_call.1} parent=1 // pred_fallthru
      _
    // Predicated region
    $region81: #{tpu_custom_call.1} parent=1 // pred_check
      _
    $region82: #{tpu_custom_call.1} parent=1 // pred_check_branch
      %683 = sbr.rel (0) target = $region84
    $region83: #{tpu_custom_call.1} parent=1 // pred_region
      %685 = dma.done [#allocation5], 288
    $region84: #{tpu_custom_call.1} parent=1 // pred_fallthru
      _
    %686 = vsyncpa [#allocation4], 1
    %687 = vsyncpa [#allocation7], 1
    %688 = vsyncpa [#allocation10], 1
    %689 = vsyncpa [#allocation5], 1

</llo_original>
